<compile_context>
chip_gen: v7x
topology: tpu7x:2x2x1
jax: 0.10.0
libtpu: 0.0.40
codegen_flags: <defaults>
</compile_context>

<pallas_src>
import functools
import math

import jax
import jax.numpy as jnp
from jax.experimental import pallas as pl
from jax.experimental.pallas import tpu as pltpu


# ----------------------------------------------------------------------------
# Reference / small-shape path (plain XLA, fused into surrounding graph).
# ----------------------------------------------------------------------------
def _sinusoidal_pos_emb_jnp(x: jax.Array, dim: int, theta: float = 10000.0) -> jax.Array:
    half_dim = dim // 2
    scale = math.log(float(theta)) / (half_dim - 1)
    freqs = jnp.exp(jnp.arange(half_dim, dtype=jnp.float32) * -scale)
    emb = x.astype(jnp.float32)[:, None] * freqs[None, :]
    return jnp.concatenate([jnp.sin(emb), jnp.cos(emb)], axis=-1)


_reference = _sinusoidal_pos_emb_jnp


# ----------------------------------------------------------------------------
# Tiling helper.
# ----------------------------------------------------------------------------
def _round_up(n: int, m: int) -> int:
    return (n + m - 1) // m * m


def _choose_block_rows(n_rows: int, in_row_bytes: int, out_row_bytes: int,
                       *, target_out_bytes: int = 1 << 20,
                       vmem_budget_bytes: int = 12 << 20) -> int:
    """Rows per block: >= ~1 MiB output/step, <= ~12 MiB double-buffered VMEM,
    sublane-aligned, and an even grid where possible (v7x megacore split)."""
    if n_rows <= 16:
        return n_rows                                    # single full-extent block
    per_row = 2 * (in_row_bytes + out_row_bytes)         # double-buffered in + out
    vmem_cap = max(8, (vmem_budget_bytes // per_row) // 8 * 8)
    target = max(8, _round_up(pl.cdiv(target_out_bytes, out_row_bytes), 8))
    tb = min(vmem_cap, target)
    n_blocks = pl.cdiv(n_rows, tb)
    if n_blocks < 2:
        n_blocks = 2                                     # feed both v7x TensorCores
    elif n_blocks % 2:
        n_blocks += 1                                    # keep the grid even
    tb = min(vmem_cap, _round_up(pl.cdiv(n_rows, n_blocks), 8))
    return max(tb, 8)


# ----------------------------------------------------------------------------
# Kernels.
# ----------------------------------------------------------------------------
def _packed_kernel(freqs_ref, sel_ref, x_ref, o_ref, *, dim: int, r: int):
    # freqs_ref: (1, 128) f32  -- freqs tiled per dim-lane group (sin|cos halves)
    # sel_ref:   (1, 128) f32  -- 1.0 on sin lanes, 0.0 on cos lanes
    # x_ref:     (tb, r)  f32  -- r timesteps per packed 128-lane output row
    # o_ref:     (tb, 128) f32 -- lane-dense packed output
    tb = x_ref.shape[0]
    x = x_ref[...]
    # Exact per-group expansion: lane-broadcast each timestep over its dim-lane
    # group and merge with a static concat (stays off the MXU -> no bf16 loss).
    x_exp = jnp.concatenate(
        [jnp.broadcast_to(x[:, g:g + 1], (tb, dim)) for g in range(r)], axis=-1)
    emb = x_exp * freqs_ref[...]                             # (tb, 128)
    o_ref[...] = jnp.where(sel_ref[...] != 0.0, jnp.sin(emb), jnp.cos(emb))


def _rowmajor_kernel(freqs_ref, x_ref, o_ref, *, half_dim: int):
    # freqs_ref: (1, half_dim); x_ref: (tb, 1); o_ref: (tb, dim)
    emb = x_ref[...] * freqs_ref[...]                        # (tb, half_dim)
    o_ref[:, pl.ds(0, half_dim)] = jnp.sin(emb)
    o_ref[:, pl.ds(half_dim, half_dim)] = jnp.cos(emb)


# ----------------------------------------------------------------------------
# Public wrapper.
# ----------------------------------------------------------------------------
def sinusoidal_pos_emb(x: jax.Array, dim: int, theta: float = 10000.0,
                       *, force_pallas: bool | None = None) -> jax.Array:
    """x: (B,) timesteps -> (B, dim) f32 sinusoidal embedding (torch-faithful)."""
    assert dim % 2 == 0, "dim must be even (torch concat of sin/cos halves)"
    assert dim >= 4, "dim must be >= 4 (half_dim - 1 == 0 otherwise, as in torch)"
    B = int(x.shape[0])
    half_dim = dim // 2

    use_pallas = force_pallas
    if use_pallas is None:
        # Tiny outputs (< ~128 KiB) are pure dispatch overhead as a custom call;
        # let XLA fuse them into the surrounding graph (time-MLP) instead.
        use_pallas = B * dim >= 32768
    if not use_pallas:
        return _sinusoidal_pos_emb_jnp(x, dim, theta)

    scale = math.log(float(theta)) / (half_dim - 1)
    # Same expression as the reference -> bit-identical frequency ladder.
    freqs = jnp.exp(jnp.arange(half_dim, dtype=jnp.float32) * -scale)
    xf = x.astype(jnp.float32)

    r = (128 // dim) if dim < 128 else 0
    can_pack = (dim < 128) and (128 % dim == 0) and (dim >= 16) and (B % (128 // dim) == 0)

    if can_pack:
        # ---- lane-packed path: r batch rows per 128-lane output row ---------
        P = B // r
        x_packed = xf.reshape(P, r)                                   # contiguous view
        freqs_row = jnp.tile(jnp.concatenate([freqs, freqs]), r).reshape(1, 128)
        sel_row = jnp.tile(
            jnp.concatenate([jnp.ones((half_dim,), jnp.float32),
                             jnp.zeros((half_dim,), jnp.float32)]), r).reshape(1, 128)

        tb = _choose_block_rows(P, in_row_bytes=128 * 4, out_row_bytes=128 * 4)
        grid = (pl.cdiv(P, tb),)

        cost = pl.CostEstimate(flops=3 * B * dim, transcendentals=2 * B * dim,
                               bytes_accessed=4 * (B + B * dim))
        out = pl.pallas_call(
            functools.partial(_packed_kernel, dim=dim, r=r),
            out_shape=jax.ShapeDtypeStruct((P, 128), jnp.float32),
            grid_spec=pltpu.PrefetchScalarGridSpec(
                num_scalar_prefetch=0,
                grid=grid,
                in_specs=[pl.BlockSpec((1, 128), lambda i: (0, 0)),
                          pl.BlockSpec((1, 128), lambda i: (0, 0)),
                          pl.BlockSpec((tb, r), lambda i: (i, 0))],
                out_specs=pl.BlockSpec((tb, 128), lambda i: (i, 0))),
            compiler_params=pltpu.CompilerParams(dimension_semantics=("parallel",)),
            cost_estimate=cost,
        )(freqs_row, sel_row, x_packed)
        # (P,128) and (B,dim) share the same contiguous HBM layout -> free reshape.
        return out.reshape(B, dim)

    # ---- general row-major path (dim >= 128, or batch not divisible by r) ---
    x2d = xf.reshape(B, 1)
    freqs2d = freqs.reshape(1, half_dim)
    dim_pad = _round_up(dim, 128)                    # lane padding of the out block
    tb = _choose_block_rows(B, in_row_bytes=128 * 4, out_row_bytes=dim_pad * 4)
    grid = (pl.cdiv(B, tb),)

    cost = pl.CostEstimate(flops=B * dim, transcendentals=B * dim,
                           bytes_accessed=4 * (B + B * dim))
    out = pl.pallas_call(
        functools.partial(_rowmajor_kernel, half_dim=half_dim),
        out_shape=jax.ShapeDtypeStruct((B, dim), jnp.float32),
        grid_spec=pltpu.PrefetchScalarGridSpec(
            num_scalar_prefetch=0,
            grid=grid,
            in_specs=[pl.BlockSpec((1, half_dim), lambda i: (0, 0)),
                      pl.BlockSpec((tb, 1), lambda i: (i, 0))],
            out_specs=pl.BlockSpec((tb, dim), lambda i: (i, 0))),
        compiler_params=pltpu.CompilerParams(dimension_semantics=("parallel",)),
        cost_estimate=cost,
    )(freqs2d, x2d)
    return out


# ----------------------------------------------------------------------------
# Self-test.
# ----------------------------------------------------------------------------
if __name__ == "__main__":
    key = jax.random.PRNGKey(0)
    k1, k2, k3, k4, k5 = jax.random.split(key, 5)

    # 1) Production-like tiny shape (B=8, dim=32): auto-dispatch -> fused XLA path.
    B, DIM = 8, 32
    x = jax.random.uniform(k1, (B,), jnp.float32, 0.0, 1000.0)
    out = jax.block_until_ready(sinusoidal_pos_emb(x, DIM, theta=10000.0))
    ref = _reference(x, DIM)
    assert out.shape == (B, DIM) and out.dtype == jnp.float32
    assert jnp.allclose(out, ref, atol=1e-5, rtol=1e-5), "mismatch (tiny / jnp path)"

    # 2) Lane-packed Pallas path, dim=64 (r=2), small args -> tight tolerance
    #    (validates the packing / per-group expansion exactly).
    B, DIM = 128, 64
    x = jax.random.uniform(k2, (B,), jnp.float32, 0.0, 10.0)
    out = jax.block_until_ready(sinusoidal_pos_emb(x, DIM, force_pallas=True))
    ref = _reference(x, DIM)
    assert jnp.allclose(out, ref, atol=1e-5, rtol=1e-5), "mismatch (packed dim=64)"

    # 3) Lane-packed path, dim=32 (r=4), multi-block grid, diffusion-scale timesteps.
    #    Looser tolerance: f32 sin/cos range reduction at |arg|~1e3 can differ
    #    slightly between the Mosaic and XLA lowerings.
    B, DIM = 4096, 32
    x = jax.random.uniform(k3, (B,), jnp.float32, 0.0, 1000.0)
    out = jax.block_until_ready(sinusoidal_pos_emb(x, DIM))
    ref = _reference(x, DIM)
    assert out.shape == (B, DIM)
    assert jnp.allclose(out, ref, atol=1e-3, rtol=1e-3), "mismatch (packed dim=32)"

    # 4) General row-major path: dim >= 128.
    B, DIM = 512, 256
    x = jax.random.uniform(k4, (B,), jnp.float32, 0.0, 1000.0)
    out = jax.block_until_ready(sinusoidal_pos_emb(x, DIM))
    ref = _reference(x, DIM)
    assert jnp.allclose(out, ref, atol=1e-3, rtol=1e-3), "mismatch (general dim=256)"

    # 5) General-path fallback (B not divisible by r) with a ragged last block.
    B, DIM = 70, 32
    x = jax.random.uniform(k5, (B,), jnp.float32, 0.0, 10.0)
    out = jax.block_until_ready(sinusoidal_pos_emb(x, DIM, force_pallas=True))
    ref = _reference(x, DIM)
    assert jnp.allclose(out, ref, atol=1e-5, rtol=1e-5), "mismatch (ragged general)"

    print("KERNEL_OK")
</pallas_src>

<mosaic_0001>
module attributes {stable_mosaic.version = 11 : i64} {
  func.func @_packed_kernel(%arg0: i32, %arg1: memref<1x128xf32, #tpu.memory_space<vmem>>, %arg2: memref<1x128xf32, #tpu.memory_space<vmem>>, %arg3: memref<32x2xf32, #tpu.memory_space<vmem>>, %arg4: memref<32x128xf32, #tpu.memory_space<vmem>>) attributes {dimension_semantics = [#tpu.dimension_semantics<parallel>], iteration_bounds = array<i64: 2>, scalar_prefetch = 0 : i64, scratch_operands = 0 : i64, tpu.core_type = #tpu.core_type<tc>, window_params = [{pipeline_mode = #tpu.pipeline_mode<synchronous>, transform_indices = @transform_0, window_bounds = array<i64: 1, 128>}, {pipeline_mode = #tpu.pipeline_mode<synchronous>, transform_indices = @transform_1, window_bounds = array<i64: 1, 128>}, {transform_indices = @transform_2, window_bounds = array<i64: 32, 2>}, {transform_indices = @transform_3, window_bounds = array<i64: 32, 128>}]} {
    %c0 = arith.constant 0 : index
    %c0_0 = arith.constant 0 : index
    %0 = vector.load %arg3[%c0, %c0_0] : memref<32x2xf32, #tpu.memory_space<vmem>>, vector<32x2xf32>
    %1 = vector.extract_strided_slice %0 {offsets = [0, 0], sizes = [32, 1], strides = [1, 1]} : vector<32x2xf32> to vector<32x1xf32>
    %2 = vector.shape_cast %1 : vector<32x1xf32> to vector<32x1xf32>
    %3 = vector.broadcast %2 : vector<32x1xf32> to vector<32x64xf32>
    %4 = vector.extract_strided_slice %0 {offsets = [0, 1], sizes = [32, 1], strides = [1, 1]} : vector<32x2xf32> to vector<32x1xf32>
    %5 = vector.shape_cast %4 : vector<32x1xf32> to vector<32x1xf32>
    %6 = vector.broadcast %5 : vector<32x1xf32> to vector<32x64xf32>
    %7 = tpu.concatenate %3, %6 in 1 : vector<32x64xf32>, vector<32x64xf32> -> vector<32x128xf32>
    %c0_1 = arith.constant 0 : index
    %c0_2 = arith.constant 0 : index
    %8 = vector.load %arg1[%c0_1, %c0_2] : memref<1x128xf32, #tpu.memory_space<vmem>>, vector<1x128xf32>
    %9 = vector.broadcast %8 : vector<1x128xf32> to vector<32x128xf32>
    %10 = arith.mulf %7, %9 : vector<32x128xf32>
    %c0_3 = arith.constant 0 : index
    %c0_4 = arith.constant 0 : index
    %11 = vector.load %arg2[%c0_3, %c0_4] : memref<1x128xf32, #tpu.memory_space<vmem>>, vector<1x128xf32>
    %cst = arith.constant 0.000000e+00 : f32
    %12 = vector.broadcast %cst : f32 to vector<1x128xf32>
    %13 = arith.cmpf one, %11, %12 : vector<1x128xf32>
    %14 = math.sin %10 : vector<32x128xf32>
    %15 = math.cos %10 : vector<32x128xf32>
    %16 = vector.shape_cast %13 : vector<1x128xi1> to vector<1x128xi1>
    %17 = vector.broadcast %16 : vector<1x128xi1> to vector<32x128xi1>
    %18 = arith.select %17, %14, %15 : vector<32x128xi1>, vector<32x128xf32>
    %c0_5 = arith.constant 0 : index
    %c0_6 = arith.constant 0 : index
    %19 = vector.load %arg4[%c0_5, %c0_6] : memref<32x128xf32, #tpu.memory_space<vmem>>, vector<32x128xf32>
    tpu.vector_store %arg4[%c0_5, %c0_6], %18 {strides = array<i32>} : memref<32x128xf32, #tpu.memory_space<vmem>>, vector<32x128xf32>,
    return
  }
  func.func @transform_0(%arg0: i32) -> (i32, i32) {
    %c0_i32 = arith.constant 0 : i32
    %c0_i32_0 = arith.constant 0 : i32
    %c0_i32_1 = arith.constant 0 : i32
    return %c0_i32, %c0_i32_0 : i32, i32
  }
  func.func @transform_1(%arg0: i32) -> (i32, i32) {
    %c0_i32 = arith.constant 0 : i32
    %c0_i32_0 = arith.constant 0 : i32
    %c0_i32_1 = arith.constant 0 : i32
    return %c0_i32, %c0_i32_0 : i32, i32
  }
  func.func @transform_2(%arg0: i32) -> (i32, i32) {
    %c0_i32 = arith.constant 0 : i32
    %c0_i32_0 = arith.constant 0 : i32
    return %arg0, %c0_i32 : i32, i32
  }
  func.func @transform_3(%arg0: i32) -> (i32, i32) {
    %c0_i32 = arith.constant 0 : i32
    %c0_i32_0 = arith.constant 0 : i32
    return %arg0, %c0_i32 : i32, i32
  }
}

</mosaic_0001>

<llo_original>
// kernel: tpu_custom_call.1
$region0: #{tpu_custom_call.1}
  #allocation0 [shape = 'u32[]', space=smem, size = 0x4, offset = 0x4, fixed_abs, tag = 'smem constant byte address 0x4 - core index']
  #allocation1 [shape = 'u32[144,128]{1,0:T(1,128)}', space=vmem, size = 0x12000, scoped, tag = 'internal scratch']
  %s0 = inlined_call_operand.vmem [shape: f32[1,128], index: 0, kind: input, shape index: {}]
  %s1 = inlined_call_operand.vmem [shape: f32[1,128], index: 1, kind: input, shape index: {}]
  %s2 = inlined_call_operand.vmem [shape: f32[64,2], index: 2, kind: input, shape index: {}]
  %s3 = inlined_call_operand.hbm [shape: f32[64,128], index: 3, kind: output, shape index: {}]
  %s4 = sld [smem:[#allocation0]]
  $region45: #{tpu_custom_call.1} parent=0
    _
  %s6 = ssub.s32 1, %s4
  %s7 = scalar_select 0, %s6, %s4
  $region1: #{tpu_custom_call.1} parent=0
    #allocation2 [shape = 'u8[32768]{0}', space=vmem, size = 0x8000, scoped, tag = 'output window, operand 0']
    #allocation3 [shape = 's32[2]{0}', space=sflag, size = 0x8, scoped, tag = 'scoped memory for tpu_custom_call.1']
    %8 = vsyncpa [#allocation3], 0
    %s9 = scalar_lea.sflag [#allocation3], 1
    %10 = vsyncpa %s9, 0
    loop: start=0, step=1, limit=4
    $region2: #{tpu_custom_call.1} parent=1 // loop_pre_header
      _
    $region3: #{tpu_custom_call.1} parent=1 // loop_header
      %s12 = sphi 0, %s16
      %p13 = scmp.ge.s32.totalorder %s12, 4
      %s20 = sphi 0, %s20
      %s22 = sphi 0, %s20
      %s23 = sphi 0, %s22
      %s37 = sphi 0, %s23
      %s41 = sphi 0, %s41
      %s43 = sphi 0, %s41
      %s44 = sphi 0, %s43
      %s58 = sphi 0, %s44
      %s64 = sphi 0, %s66
      %s67 = sphi 0, %s64
      %s68 = sphi 0, %s67
      %s84 = sphi 0, %s68
      %s90 = sphi 0, %s92
      %s93 = sphi 0, %s90
      %s94 = sphi 0, %s93
      %s110 = sphi 0, %s94
    $region4: #{tpu_custom_call.1} parent=1 // loop_header_branch
      %15 = sbr.rel (%p13) target = $region8
    $region5: #{tpu_custom_call.1} parent=1 // loop_body
      %s17 = ssub.s32 %s12, 1
      %s18 = ssub.s32 %s12, 2
      %s19 = sadd.s32 %s12, 1
      %s21 = sadd.s32 %s20, 1
      %p24 = scmp.eq.s32.totalorder %s12, 1
      %p25 = scmp.ne.s32.totalorder %s20, %s22
      %p26 = scmp.eq.s32.totalorder %s12, 0
      %p27 = por %p25, %p26
      %p28 = scmp.ne.s32.totalorder %s20, %s22
      %p29 = scmp.eq.s32.totalorder %s17, 1
      %p30 = por %p28, %p29
      %p31 = scmp.ne.s32.totalorder %s22, %s23
      %p32 = scmp.eq.s32.totalorder %s17, 0
      %p33 = por %p31, %p32
      %p34 = scmp.ne.s32.totalorder %s22, %s23
      %p35 = scmp.eq.s32.totalorder %s18, 1
      %p36 = por %p34, %p35
      %p38 = scmp.ne.s32.totalorder %s23, %s37
      %p39 = scmp.eq.s32.totalorder %s18, 0
      %p40 = por %p38, %p39
      %s42 = sadd.s32 %s41, 1
      %p45 = scmp.eq.s32.totalorder %s12, 1
      %p46 = scmp.ne.s32.totalorder %s41, %s43
      %p47 = scmp.eq.s32.totalorder %s12, 0
      %p48 = por %p46, %p47
      %p49 = scmp.ne.s32.totalorder %s41, %s43
      %p50 = scmp.eq.s32.totalorder %s17, 1
      %p51 = por %p49, %p50
      %p52 = scmp.ne.s32.totalorder %s43, %s44
      %p53 = scmp.eq.s32.totalorder %s17, 0
      %p54 = por %p52, %p53
      %p55 = scmp.ne.s32.totalorder %s43, %s44
      %p56 = scmp.eq.s32.totalorder %s18, 1
      %p57 = por %p55, %p56
      %p59 = scmp.ne.s32.totalorder %s44, %s58
      %p60 = scmp.eq.s32.totalorder %s18, 0
      %p61 = por %p59, %p60
      %s62 = ssub.s32 %s12, %s19
      %p63 = scmp.eq.s32.totalorder %s62, 0
      %s65 = sadd.s32 %s64, 1
      %s66 = scalar_select %p63, %s64, %s65
      %p69 = pneg %p63
      %p70 = scmp.eq.s32.totalorder %s12, 1
      %p71 = por %p69, %p70
      %p72 = scmp.ne.s32.totalorder %s64, %s67
      %p73 = scmp.eq.s32.totalorder %s12, 0
      %p74 = por %p72, %p73
      %p75 = scmp.ne.s32.totalorder %s64, %s67
      %p76 = scmp.eq.s32.totalorder %s17, 1
      %p77 = por %p75, %p76
      %p78 = scmp.ne.s32.totalorder %s67, %s68
      %p79 = scmp.eq.s32.totalorder %s17, 0
      %p80 = por %p78, %p79
      %p81 = scmp.ne.s32.totalorder %s67, %s68
      %p82 = scmp.eq.s32.totalorder %s18, 1
      %p83 = por %p81, %p82
      %p85 = scmp.ne.s32.totalorder %s68, %s84
      %p86 = scmp.eq.s32.totalorder %s18, 0
      %p87 = por %p85, %p86
      %s88 = ssub.s32 %s12, %s19
      %p89 = scmp.eq.s32.totalorder %s88, 0
      %s91 = sadd.s32 %s90, 1
      %s92 = scalar_select %p89, %s90, %s91
      %p95 = pneg %p89
      %p96 = scmp.eq.s32.totalorder %s12, 1
      %p97 = por %p95, %p96
      %p98 = scmp.ne.s32.totalorder %s90, %s93
      %p99 = scmp.eq.s32.totalorder %s12, 0
      %p100 = por %p98, %p99
      %p101 = scmp.ne.s32.totalorder %s90, %s93
      %p102 = scmp.eq.s32.totalorder %s17, 1
      %p103 = por %p101, %p102
      %p104 = scmp.ne.s32.totalorder %s93, %s94
      %p105 = scmp.eq.s32.totalorder %s17, 0
      %p106 = por %p104, %p105
      %p107 = scmp.ne.s32.totalorder %s93, %s94
      %p108 = scmp.eq.s32.totalorder %s18, 1
      %p109 = por %p107, %p108
      %p111 = scmp.ne.s32.totalorder %s94, %s110
      %p112 = scmp.eq.s32.totalorder %s18, 0
      %p113 = por %p111, %p112
      %p114 = scmp.le.s32.totalorder 1, %s12
      %p115 = scmp.lt.s32.totalorder %s12, 3
      %p116 = pnand %p114, %p115
      %p117 = pneg %p116
      // Predicated region
      $region9: #{tpu_custom_call.1} parent=5 // pred_check
        _
      $region10: #{tpu_custom_call.1} parent=5 // pred_check_branch
        %119 = sbr.rel (%p116) target = $region12
      $region11: #{tpu_custom_call.1} parent=5 // pred_region
        %s120 = ssub.s32 %s12, 1
        // Predicated region
        $region13: #{tpu_custom_call.1} parent=11 // pred_check
          %p121 = pneg %p33
        $region14: #{tpu_custom_call.1} parent=11 // pred_check_branch
          %123 = sbr.rel (%p121) target = $region16
        $region15: #{tpu_custom_call.1} parent=11 // pred_region
          _
        $region16: #{tpu_custom_call.1} parent=11 // pred_fallthru
          _
        // Predicated region
        $region17: #{tpu_custom_call.1} parent=11 // pred_check
          %p124 = pneg %p54
        $region18: #{tpu_custom_call.1} parent=11 // pred_check_branch
          %126 = sbr.rel (%p124) target = $region20
        $region19: #{tpu_custom_call.1} parent=11 // pred_region
          _
        $region20: #{tpu_custom_call.1} parent=11 // pred_fallthru
          _
      $region12: #{tpu_custom_call.1} parent=5 // pred_fallthru
        _
      %p127 = scmp.lt.s32.totalorder %s12, 2
      // Predicated region
      $region21: #{tpu_custom_call.1} parent=5 // pred_check
        %p128 = pneg %p127
      $region22: #{tpu_custom_call.1} parent=5 // pred_check_branch
        %130 = sbr.rel (%p128) target = $region24
      $region23: #{tpu_custom_call.1} parent=5 // pred_region
        // Predicated region
        $region25: #{tpu_custom_call.1} parent=23 // pred_check
          %p131 = pneg %p74
        $region26: #{tpu_custom_call.1} parent=23 // pred_check_branch
          %133 = sbr.rel (%p131) target = $region28
        $region27: #{tpu_custom_call.1} parent=23 // pred_region
          %s134 = smul.u32 4, %s12
          %p135 = scmp.lt.s32.totalorder %s134, 7
          %s136 = scalar_select %p135, %s134, 7
          %s137 = smul.addr %s136, 8
          %s138 = scalar_lea.vmem %s2, %s137
          %s139 = smul.u32 4, %s12
        $region28: #{tpu_custom_call.1} parent=23 // pred_fallthru
          _
      $region24: #{tpu_custom_call.1} parent=5 // pred_fallthru
        _
      %p140 = scmp.le.s32.totalorder 1, %s12
      %p141 = scmp.lt.s32.totalorder %s12, 3
      %p142 = pnand %p140, %p141
      %p143 = pneg %p142
      // Predicated region
      $region29: #{tpu_custom_call.1} parent=5 // pred_check
        _
      $region30: #{tpu_custom_call.1} parent=5 // pred_check_branch
        %145 = sbr.rel (%p142) target = $region32
      $region31: #{tpu_custom_call.1} parent=5 // pred_region
        %s146 = ssub.s32 %s12, 1
        %p147 = pneg %p33
        %p148 = pneg %p30
        %p149 = pneg %p54
        %p150 = pneg %p51
        %s151 = smul.u32 4, %s17
        %p152 = scmp.lt.s32.totalorder %s151, 7
        %s153 = scalar_select %p152, %s151, 7
        %s154 = smul.addr %s153, 8
        %s155 = scalar_lea.vmem %s2, %s154
        %p156 = pneg %p80
        %p157 = pneg %p77
        %p158 = pneg %p106
        %p159 = pneg %p103
        %s160 = sand.u32 %s93, 1
        %s161 = scalar_lea.sflag [#allocation3], %s160
        %s162 = sand.u32 %s93, 1
        %s163 = smul.addr %s162, 32
        %s164 = scalar_lea.vmem [#allocation2], %s163
        %s165 = smul.u32 4, %s17
        %p166 = scmp.lt.s32.totalorder %s165, 7
        %s167 = scalar_select %p166, %s165, 7
        %s168 = smul.addr %s167, 8
        %s169 = scalar_lea.vmem %s2, %s168
        %s170 = smul.u32 4, %s17
        %s171 = smul.u32 4, %s17
        %v172 = vld [vmem:[%s169] sm:$0xff]
        %v173 = vld [vmem:[%s169 + $0x8] sm:$0xff]
        %v174 = vld [vmem:[%s169 + $0x10] sm:$0xff]
        %v175 = vld [vmem:[%s169 + $0x18] sm:$0xff]
        %177 = vset.pattern.permute.xlu0 0
        %178 = vperm.xlu0 %177, %v172
        %v179 = vpop.permute.xlu0 %178
        %182 = vset.pattern.permute.xlu0 0
        %183 = vperm.xlu0 %182, %v173
        %v184 = vpop.permute.xlu0 %183
        %187 = vset.pattern.permute.xlu0 0
        %188 = vperm.xlu0 %187, %v174
        %v189 = vpop.permute.xlu0 %188
        %192 = vset.pattern.permute.xlu0 0
        %193 = vperm.xlu0 %192, %v175
        %v194 = vpop.permute.xlu0 %193
        %196 = vset.pattern.permute.xlu0 1
        %197 = vperm.xlu0 %196, %v172
        %v198 = vpop.permute.xlu0 %197
        %200 = vset.pattern.permute.xlu0 1
        %201 = vperm.xlu0 %200, %v173
        %v202 = vpop.permute.xlu0 %201
        %204 = vset.pattern.permute.xlu0 1
        %205 = vperm.xlu0 %204, %v174
        %v206 = vpop.permute.xlu0 %205
        %208 = vset.pattern.permute.xlu0 1
        %209 = vperm.xlu0 %208, %v175
        %v210 = vpop.permute.xlu0 %209
        %vm212 = vcmask 523264
        %v213 = vsel %vm212, %v179, %v198
        %v214 = vsel %vm212, %v184, %v202
        %v215 = vsel %vm212, %v189, %v206
        %v216 = vsel %vm212, %v194, %v210
        %v217 = vld [vmem:[%s0] sm:$0x1]
        %v219 = vlaneseq
        %v220 = vshrl.u32 %v219, 7
        %v221 = vsub.s32 0, %v220
        %v222 = vrot.slane %v217, %v221
        %v224 = vmul.f32 %v213, %v222
        %v225 = vmul.f32 %v214, %v222
        %v226 = vmul.f32 %v215, %v222
        %v227 = vmul.f32 %v216, %v222
        %v228 = vld [vmem:[%s1] sm:$0x1]
        %vm229 = vcmp.ne.f32.partialorder %v228, 0.0
        %v230 = vand.u32 2147483647, %v224
        %vm231 = vcmp.le.f32.partialorder %v230, 0.7853982
        %vm232 = vcmp.lt.s32.totalorder %v224, 0
        %v233 = vand.u32 %v224, 2139095040
        %v234 = vshrl.u32 %v233, 23
        %v235 = vsub.s32 %v234, 127
        %v236 = vand.u32 2147483647, %v224
        %v237 = vand.u32 %v236, 8388607
        %v238 = vor.u32 %v237, 8388608
        %v239 = vsub.s32 0, %v238
        %v240 = vadd.s32 %v235, 1
        %vm241 = vcmp.gt.s32.totalorder %v240, 0
        %v242 = vsel %vm241, %v240, 0
        %v243 = vshrl.u32 %v242, 5
        %v244 = vand.u32 %v242, 31
        %v245 = vsub.s32 32, %v244
        %v246 = vshrl.u32 683565275, %v245
        %v247 = vshll.u32 683565275, %v244
        %v248 = vshrl.u32 2475754826, %v245
        %v249 = vor.u32 %v247, %v248
        %v250 = vshll.u32 2475754826, %v244
        %v251 = vshrl.u32 2131351028, %v245
        %v252 = vor.u32 %v250, %v251
        %v253 = vshll.u32 2131351028, %v244
        %v254 = vshrl.u32 2102212464, %v245
        %v255 = vor.u32 %v253, %v254
        %v256 = vshll.u32 2102212464, %v244
        %v257 = vshrl.u32 920167782, %v245
        %v258 = vor.u32 %v256, %v257
        %v259 = vshll.u32 920167782, %v244
        %v260 = vshrl.u32 1326507024, %v245
        %v261 = vor.u32 %v259, %v260
        %vm262 = vcmp.lt.s32.totalorder %v243, 1
        %vm263 = vcmp.lt.s32.totalorder %v243, 2
        %vm264 = vcmp.lt.s32.totalorder %v243, 3
        %vm265 = vcmp.lt.s32.totalorder %v243, 4
        %v266 = vsel %vm262, %v246, %v249
        %v267 = vsel %vm265, %v255, 2102212464
        %v268 = vsel %vm264, %v252, %v267
        %v269 = vsel %vm263, %v266, %v268
        %v270 = vsel %vm262, %v249, %v252
        %v271 = vsel %vm265, %v258, 920167782
        %v272 = vsel %vm264, %v255, %v271
        %v273 = vsel %vm263, %v270, %v272
        %v274 = vsel %vm262, %v252, %v255
        %v275 = vsel %vm265, %v261, 1326507024
        %v276 = vsel %vm264, %v258, %v275
        %v277 = vsel %vm263, %v274, %v276
        %v278 = vshll.u32 %v238, 8
        %v279 = vmul.u32.u64.compose %v278, %v277
        %v280 = vextract.low.u32 %v279
        %v281 = vextract.high.u32 %v279
        %v282 = vmul.u32.u64.compose %v278, %v273
        %v283 = vextract.low.u32 %v282
        %v284 = vextract.high.u32 %v282
        %v285 = vmul.u32 %v278, %v269
        %v286 = vadd.s32 %v281, %v283
        %vm287 = vc.u32 %v281, %v283
        %v288 = vadd.s32 %v284, 1
        %v289 = vsel %vm287, %v288, %v284
        %v290 = vadd.s32 %v285, %v289
        %v291 = vadd.s32 %v290, 536870912
        %v292 = vshrl.u32 %v291, 30
        %v293 = vshll.u32 %v292, 30
        %v294 = vsub.s32 %v290, %v293
        %vm295 = vcmp.lt.s32.totalorder %v294, 0
        %v296 = vsub.s32 0, %v294
        %v297 = vsel %vm295, %v296, %v294
        %v298 = vclz %v297
        %v299 = vsub.s32 %v298, 2
        %vm300 = vcmp.gt.s32.totalorder 0, %v299
        %v301 = vsel %vm300, 0, %v299
        %v302 = vsub.s32 32, %v301
        %v303 = vshll.u32 %v294, %v301
        %v304 = vshrl.u32 %v286, %v302
        %v305 = vor.u32 %v303, %v304
        %v306 = vsub.s32 4294967266, %v301
        %v307 = vadd.s32 %v306, 127
        %v308 = vshll.u32 %v307, 23
        %v309 = vor.u32 4788187, %v308
        %v310 = vand.u32 2147483647, %v309
        %v312 = vcvt.s32.f32 %v305
        %v313 = vmul.f32 %v312, %v310
        %v314 = vxor.u32 %v313, 2147483648
        %v315 = vsel %vm232, %v314, %v313
        %v316 = vsub.s32 4, %v292
        %v317 = vsel %vm232, %v316, %v292
        %v318 = vsel %vm231, %v224, %v315
        %v319 = vsel %vm231, 0, %v317
        %v320 = vcosq.f32.pop %v318
        %v321 = vsinq.f32.pop %v318
        %vm322 = vweird.f32 %v224
        %v323 = vadd.s32 %v319, 3
        %v324 = vand.u32 %v323, 3
        %vm325 = vcmp.lt.s32.totalorder %v324, 2
        %vm326 = vcmp.eq.s32.totalorder %v324, 0
        %v327 = vxor.u32 %v321, 2147483648
        %v328 = vsel %vm326, %v320, %v327
        %vm329 = vcmp.eq.s32.totalorder %v324, 2
        %v330 = vxor.u32 %v320, 2147483648
        %v331 = vsel %vm329, %v330, %v321
        %v332 = vsel %vm325, %v328, %v331
        %v333 = vsel %vm322, nan, %v332
        %v334 = vand.u32 2147483647, %v225
        %vm335 = vcmp.le.f32.partialorder %v334, 0.7853982
        %vm336 = vcmp.lt.s32.totalorder %v225, 0
        %v337 = vand.u32 %v225, 2139095040
        %v338 = vshrl.u32 %v337, 23
        %v339 = vsub.s32 %v338, 127
        %v340 = vand.u32 2147483647, %v225
        %v341 = vand.u32 %v340, 8388607
        %v342 = vor.u32 %v341, 8388608
        %v343 = vsub.s32 0, %v342
        %v344 = vadd.s32 %v339, 1
        %vm345 = vcmp.gt.s32.totalorder %v344, 0
        %v346 = vsel %vm345, %v344, 0
        %v347 = vshrl.u32 %v346, 5
        %v348 = vand.u32 %v346, 31
        %v349 = vsub.s32 32, %v348
        %v350 = vshrl.u32 683565275, %v349
        %v351 = vshll.u32 683565275, %v348
        %v352 = vshrl.u32 2475754826, %v349
        %v353 = vor.u32 %v351, %v352
        %v354 = vshll.u32 2475754826, %v348
        %v355 = vshrl.u32 2131351028, %v349
        %v356 = vor.u32 %v354, %v355
        %v357 = vshll.u32 2131351028, %v348
        %v358 = vshrl.u32 2102212464, %v349
        %v359 = vor.u32 %v357, %v358
        %v360 = vshll.u32 2102212464, %v348
        %v361 = vshrl.u32 920167782, %v349
        %v362 = vor.u32 %v360, %v361
        %v363 = vshll.u32 920167782, %v348
        %v364 = vshrl.u32 1326507024, %v349
        %v365 = vor.u32 %v363, %v364
        %vm366 = vcmp.lt.s32.totalorder %v347, 1
        %vm367 = vcmp.lt.s32.totalorder %v347, 2
        %vm368 = vcmp.lt.s32.totalorder %v347, 3
        %vm369 = vcmp.lt.s32.totalorder %v347, 4
        %v370 = vsel %vm366, %v350, %v353
        %v371 = vsel %vm369, %v359, 2102212464
        %v372 = vsel %vm368, %v356, %v371
        %v373 = vsel %vm367, %v370, %v372
        %v374 = vsel %vm366, %v353, %v356
        %v375 = vsel %vm369, %v362, 920167782
        %v376 = vsel %vm368, %v359, %v375
        %v377 = vsel %vm367, %v374, %v376
        %v378 = vsel %vm366, %v356, %v359
        %v379 = vsel %vm369, %v365, 1326507024
        %v380 = vsel %vm368, %v362, %v379
        %v381 = vsel %vm367, %v378, %v380
        %v382 = vshll.u32 %v342, 8
        %v383 = vmul.u32.u64.compose %v382, %v381
        %v384 = vextract.low.u32 %v383
        %v385 = vextract.high.u32 %v383
        %v386 = vmul.u32.u64.compose %v382, %v377
        %v387 = vextract.low.u32 %v386
        %v388 = vextract.high.u32 %v386
        %v389 = vmul.u32 %v382, %v373
        %v390 = vadd.s32 %v385, %v387
        %vm391 = vc.u32 %v385, %v387
        %v392 = vadd.s32 %v388, 1
        %v393 = vsel %vm391, %v392, %v388
        %v394 = vadd.s32 %v389, %v393
        %v395 = vadd.s32 %v394, 536870912
        %v396 = vshrl.u32 %v395, 30
        %v397 = vshll.u32 %v396, 30
        %v398 = vsub.s32 %v394, %v397
        %vm399 = vcmp.lt.s32.totalorder %v398, 0
        %v400 = vsub.s32 0, %v398
        %v401 = vsel %vm399, %v400, %v398
        %v402 = vclz %v401
        %v403 = vsub.s32 %v402, 2
        %vm404 = vcmp.gt.s32.totalorder 0, %v403
        %v405 = vsel %vm404, 0, %v403
        %v406 = vsub.s32 32, %v405
        %v407 = vshll.u32 %v398, %v405
        %v408 = vshrl.u32 %v390, %v406
        %v409 = vor.u32 %v407, %v408
        %v410 = vsub.s32 4294967266, %v405
        %v411 = vadd.s32 %v410, 127
        %v412 = vshll.u32 %v411, 23
        %v413 = vor.u32 4788187, %v412
        %v414 = vand.u32 2147483647, %v413
        %v416 = vcvt.s32.f32 %v409
        %v417 = vmul.f32 %v416, %v414
        %v418 = vxor.u32 %v417, 2147483648
        %v419 = vsel %vm336, %v418, %v417
        %v420 = vsub.s32 4, %v396
        %v421 = vsel %vm336, %v420, %v396
        %v422 = vsel %vm335, %v225, %v419
        %v423 = vsel %vm335, 0, %v421
        %v424 = vcosq.f32.pop %v422
        %v425 = vsinq.f32.pop %v422
        %vm426 = vweird.f32 %v225
        %v427 = vadd.s32 %v423, 3
        %v428 = vand.u32 %v427, 3
        %vm429 = vcmp.lt.s32.totalorder %v428, 2
        %vm430 = vcmp.eq.s32.totalorder %v428, 0
        %v431 = vxor.u32 %v425, 2147483648
        %v432 = vsel %vm430, %v424, %v431
        %vm433 = vcmp.eq.s32.totalorder %v428, 2
        %v434 = vxor.u32 %v424, 2147483648
        %v435 = vsel %vm433, %v434, %v425
        %v436 = vsel %vm429, %v432, %v435
        %v437 = vsel %vm426, nan, %v436
        %v438 = vand.u32 2147483647, %v226
        %vm439 = vcmp.le.f32.partialorder %v438, 0.7853982
        %vm440 = vcmp.lt.s32.totalorder %v226, 0
        %v441 = vand.u32 %v226, 2139095040
        %v442 = vshrl.u32 %v441, 23
        %v443 = vsub.s32 %v442, 127
        %v444 = vand.u32 2147483647, %v226
        %v445 = vand.u32 %v444, 8388607
        %v446 = vor.u32 %v445, 8388608
        %v447 = vsub.s32 0, %v446
        %v448 = vadd.s32 %v443, 1
        %vm449 = vcmp.gt.s32.totalorder %v448, 0
        %v450 = vsel %vm449, %v448, 0
        %v451 = vshrl.u32 %v450, 5
        %v452 = vand.u32 %v450, 31
        %v453 = vsub.s32 32, %v452
        %v454 = vshrl.u32 683565275, %v453
        %v455 = vshll.u32 683565275, %v452
        %v456 = vshrl.u32 2475754826, %v453
        %v457 = vor.u32 %v455, %v456
        %v458 = vshll.u32 2475754826, %v452
        %v459 = vshrl.u32 2131351028, %v453
        %v460 = vor.u32 %v458, %v459
        %v461 = vshll.u32 2131351028, %v452
        %v462 = vshrl.u32 2102212464, %v453
        %v463 = vor.u32 %v461, %v462
        %v464 = vshll.u32 2102212464, %v452
        %v465 = vshrl.u32 920167782, %v453
        %v466 = vor.u32 %v464, %v465
        %v467 = vshll.u32 920167782, %v452
        %v468 = vshrl.u32 1326507024, %v453
        %v469 = vor.u32 %v467, %v468
        %vm470 = vcmp.lt.s32.totalorder %v451, 1
        %vm471 = vcmp.lt.s32.totalorder %v451, 2
        %vm472 = vcmp.lt.s32.totalorder %v451, 3
        %vm473 = vcmp.lt.s32.totalorder %v451, 4
        %v474 = vsel %vm470, %v454, %v457
        %v475 = vsel %vm473, %v463, 2102212464
        %v476 = vsel %vm472, %v460, %v475
        %v477 = vsel %vm471, %v474, %v476
        %v478 = vsel %vm470, %v457, %v460
        %v479 = vsel %vm473, %v466, 920167782
        %v480 = vsel %vm472, %v463, %v479
        %v481 = vsel %vm471, %v478, %v480
        %v482 = vsel %vm470, %v460, %v463
        %v483 = vsel %vm473, %v469, 1326507024
        %v484 = vsel %vm472, %v466, %v483
        %v485 = vsel %vm471, %v482, %v484
        %v486 = vshll.u32 %v446, 8
        %v487 = vmul.u32.u64.compose %v486, %v485
        %v488 = vextract.low.u32 %v487
        %v489 = vextract.high.u32 %v487
        %v490 = vmul.u32.u64.compose %v486, %v481
        %v491 = vextract.low.u32 %v490
        %v492 = vextract.high.u32 %v490
        %v493 = vmul.u32 %v486, %v477
        %v494 = vadd.s32 %v489, %v491
        %vm495 = vc.u32 %v489, %v491
        %v496 = vadd.s32 %v492, 1
        %v497 = vsel %vm495, %v496, %v492
        %v498 = vadd.s32 %v493, %v497
        %v499 = vadd.s32 %v498, 536870912
        %v500 = vshrl.u32 %v499, 30
        %v501 = vshll.u32 %v500, 30
        %v502 = vsub.s32 %v498, %v501
        %vm503 = vcmp.lt.s32.totalorder %v502, 0
        %v504 = vsub.s32 0, %v502
        %v505 = vsel %vm503, %v504, %v502
        %v506 = vclz %v505
        %v507 = vsub.s32 %v506, 2
        %vm508 = vcmp.gt.s32.totalorder 0, %v507
        %v509 = vsel %vm508, 0, %v507
        %v510 = vsub.s32 32, %v509
        %v511 = vshll.u32 %v502, %v509
        %v512 = vshrl.u32 %v494, %v510
        %v513 = vor.u32 %v511, %v512
        %v514 = vsub.s32 4294967266, %v509
        %v515 = vadd.s32 %v514, 127
        %v516 = vshll.u32 %v515, 23
        %v517 = vor.u32 4788187, %v516
        %v518 = vand.u32 2147483647, %v517
        %v520 = vcvt.s32.f32 %v513
        %v521 = vmul.f32 %v520, %v518
        %v522 = vxor.u32 %v521, 2147483648
        %v523 = vsel %vm440, %v522, %v521
        %v524 = vsub.s32 4, %v500
        %v525 = vsel %vm440, %v524, %v500
        %v526 = vsel %vm439, %v226, %v523
        %v527 = vsel %vm439, 0, %v525
        %v528 = vcosq.f32.pop %v526
        %v529 = vsinq.f32.pop %v526
        %vm530 = vweird.f32 %v226
        %v531 = vadd.s32 %v527, 3
        %v532 = vand.u32 %v531, 3
        %vm533 = vcmp.lt.s32.totalorder %v532, 2
        %vm534 = vcmp.eq.s32.totalorder %v532, 0
        %v535 = vxor.u32 %v529, 2147483648
        %v536 = vsel %vm534, %v528, %v535
        %vm537 = vcmp.eq.s32.totalorder %v532, 2
        %v538 = vxor.u32 %v528, 2147483648
        %v539 = vsel %vm537, %v538, %v529
        %v540 = vsel %vm533, %v536, %v539
        %v541 = vsel %vm530, nan, %v540
        %v542 = vand.u32 2147483647, %v227
        %vm543 = vcmp.le.f32.partialorder %v542, 0.7853982
        %vm544 = vcmp.lt.s32.totalorder %v227, 0
        %v545 = vand.u32 %v227, 2139095040
        %v546 = vshrl.u32 %v545, 23
        %v547 = vsub.s32 %v546, 127
        %v548 = vand.u32 2147483647, %v227
        %v549 = vand.u32 %v548, 8388607
        %v550 = vor.u32 %v549, 8388608
        %v551 = vsub.s32 0, %v550
        %v552 = vadd.s32 %v547, 1
        %vm553 = vcmp.gt.s32.totalorder %v552, 0
        %v554 = vsel %vm553, %v552, 0
        %v555 = vshrl.u32 %v554, 5
        %v556 = vand.u32 %v554, 31
        %v557 = vsub.s32 32, %v556
        %v558 = vshrl.u32 683565275, %v557
        %v559 = vshll.u32 683565275, %v556
        %v560 = vshrl.u32 2475754826, %v557
        %v561 = vor.u32 %v559, %v560
        %v562 = vshll.u32 2475754826, %v556
        %v563 = vshrl.u32 2131351028, %v557
        %v564 = vor.u32 %v562, %v563
        %v565 = vshll.u32 2131351028, %v556
        %v566 = vshrl.u32 2102212464, %v557
        %v567 = vor.u32 %v565, %v566
        %v568 = vshll.u32 2102212464, %v556
        %v569 = vshrl.u32 920167782, %v557
        %v570 = vor.u32 %v568, %v569
        %v571 = vshll.u32 920167782, %v556
        %v572 = vshrl.u32 1326507024, %v557
        %v573 = vor.u32 %v571, %v572
        %vm574 = vcmp.lt.s32.totalorder %v555, 1
        %vm575 = vcmp.lt.s32.totalorder %v555, 2
        %vm576 = vcmp.lt.s32.totalorder %v555, 3
        %vm577 = vcmp.lt.s32.totalorder %v555, 4
        %v578 = vsel %vm574, %v558, %v561
        %v579 = vsel %vm577, %v567, 2102212464
        %v580 = vsel %vm576, %v564, %v579
        %v581 = vsel %vm575, %v578, %v580
        %v582 = vsel %vm574, %v561, %v564
        %v583 = vsel %vm577, %v570, 920167782
        %v584 = vsel %vm576, %v567, %v583
        %v585 = vsel %vm575, %v582, %v584
        %v586 = vsel %vm574, %v564, %v567
        %v587 = vsel %vm577, %v573, 1326507024
        %v588 = vsel %vm576, %v570, %v587
        %v589 = vsel %vm575, %v586, %v588
        %v590 = vshll.u32 %v550, 8
        %v591 = vmul.u32.u64.compose %v590, %v589
        %v592 = vextract.low.u32 %v591
        %v593 = vextract.high.u32 %v591
        %v594 = vmul.u32.u64.compose %v590, %v585
        %v595 = vextract.low.u32 %v594
        %v596 = vextract.high.u32 %v594
        %v597 = vmul.u32 %v590, %v581
        %v598 = vadd.s32 %v593, %v595
        %vm599 = vc.u32 %v593, %v595
        %v600 = vadd.s32 %v596, 1
        %v601 = vsel %vm599, %v600, %v596
        %v602 = vadd.s32 %v597, %v601
        %v603 = vadd.s32 %v602, 536870912
        %v604 = vshrl.u32 %v603, 30
        %v605 = vshll.u32 %v604, 30
        %v606 = vsub.s32 %v602, %v605
        %vm607 = vcmp.lt.s32.totalorder %v606, 0
        %v608 = vsub.s32 0, %v606
        %v609 = vsel %vm607, %v608, %v606
        %v610 = vclz %v609
        %v611 = vsub.s32 %v610, 2
        %vm612 = vcmp.gt.s32.totalorder 0, %v611
        %v613 = vsel %vm612, 0, %v611
        %v614 = vsub.s32 32, %v613
        %v615 = vshll.u32 %v606, %v613
        %v616 = vshrl.u32 %v598, %v614
        %v617 = vor.u32 %v615, %v616
        %v618 = vsub.s32 4294967266, %v613
        %v619 = vadd.s32 %v618, 127
        %v620 = vshll.u32 %v619, 23
        %v621 = vor.u32 4788187, %v620
        %v622 = vand.u32 2147483647, %v621
        %v624 = vcvt.s32.f32 %v617
        %v625 = vmul.f32 %v624, %v622
        %v626 = vxor.u32 %v625, 2147483648
        %v627 = vsel %vm544, %v626, %v625
        %v628 = vsub.s32 4, %v604
        %v629 = vsel %vm544, %v628, %v604
        %v630 = vsel %vm543, %v227, %v627
        %v631 = vsel %vm543, 0, %v629
        %v632 = vcosq.f32.pop %v630
        %v633 = vsinq.f32.pop %v630
        %vm634 = vweird.f32 %v227
        %v635 = vadd.s32 %v631, 3
        %v636 = vand.u32 %v635, 3
        %vm637 = vcmp.lt.s32.totalorder %v636, 2
        %vm638 = vcmp.eq.s32.totalorder %v636, 0
        %v639 = vxor.u32 %v633, 2147483648
        %v640 = vsel %vm638, %v632, %v639
        %vm641 = vcmp.eq.s32.totalorder %v636, 2
        %v642 = vxor.u32 %v632, 2147483648
        %v643 = vsel %vm641, %v642, %v633
        %v644 = vsel %vm637, %v640, %v643
        %v645 = vsel %vm634, nan, %v644
        %v646 = vand.u32 2147483647, %v224
        %vm647 = vcmp.le.f32.partialorder %v646, 0.7853982
        %vm648 = vcmp.lt.s32.totalorder %v224, 0
        %v649 = vand.u32 %v224, 2139095040
        %v650 = vshrl.u32 %v649, 23
        %v651 = vsub.s32 %v650, 127
        %v652 = vand.u32 2147483647, %v224
        %v653 = vand.u32 %v652, 8388607
        %v654 = vor.u32 %v653, 8388608
        %v655 = vsub.s32 0, %v654
        %v656 = vadd.s32 %v651, 1
        %vm657 = vcmp.gt.s32.totalorder %v656, 0
        %v658 = vsel %vm657, %v656, 0
        %v659 = vshrl.u32 %v658, 5
        %v660 = vand.u32 %v658, 31
        %v661 = vsub.s32 32, %v660
        %v662 = vshrl.u32 683565275, %v661
        %v663 = vshll.u32 683565275, %v660
        %v664 = vshrl.u32 2475754826, %v661
        %v665 = vor.u32 %v663, %v664
        %v666 = vshll.u32 2475754826, %v660
        %v667 = vshrl.u32 2131351028, %v661
        %v668 = vor.u32 %v666, %v667
        %v669 = vshll.u32 2131351028, %v660
        %v670 = vshrl.u32 2102212464, %v661
        %v671 = vor.u32 %v669, %v670
        %v672 = vshll.u32 2102212464, %v660
        %v673 = vshrl.u32 920167782, %v661
        %v674 = vor.u32 %v672, %v673
        %v675 = vshll.u32 920167782, %v660
        %v676 = vshrl.u32 1326507024, %v661
        %v677 = vor.u32 %v675, %v676
        %vm678 = vcmp.lt.s32.totalorder %v659, 1
        %vm679 = vcmp.lt.s32.totalorder %v659, 2
        %vm680 = vcmp.lt.s32.totalorder %v659, 3
        %vm681 = vcmp.lt.s32.totalorder %v659, 4
        %v682 = vsel %vm678, %v662, %v665
        %v683 = vsel %vm681, %v671, 2102212464
        %v684 = vsel %vm680, %v668, %v683
        %v685 = vsel %vm679, %v682, %v684
        %v686 = vsel %vm678, %v665, %v668
        %v687 = vsel %vm681, %v674, 920167782
        %v688 = vsel %vm680, %v671, %v687
        %v689 = vsel %vm679, %v686, %v688
        %v690 = vsel %vm678, %v668, %v671
        %v691 = vsel %vm681, %v677, 1326507024
        %v692 = vsel %vm680, %v674, %v691
        %v693 = vsel %vm679, %v690, %v692
        %v694 = vshll.u32 %v654, 8
        %v695 = vmul.u32.u64.compose %v694, %v693
        %v696 = vextract.low.u32 %v695
        %v697 = vextract.high.u32 %v695
        %v698 = vmul.u32.u64.compose %v694, %v689
        %v699 = vextract.low.u32 %v698
        %v700 = vextract.high.u32 %v698
        %v701 = vmul.u32 %v694, %v685
        %v702 = vadd.s32 %v697, %v699
        %vm703 = vc.u32 %v697, %v699
        %v704 = vadd.s32 %v700, 1
        %v705 = vsel %vm703, %v704, %v700
        %v706 = vadd.s32 %v701, %v705
        %v707 = vadd.s32 %v706, 536870912
        %v708 = vshrl.u32 %v707, 30
        %v709 = vshll.u32 %v708, 30
        %v710 = vsub.s32 %v706, %v709
        %vm711 = vcmp.lt.s32.totalorder %v710, 0
        %v712 = vsub.s32 0, %v710
        %v713 = vsel %vm711, %v712, %v710
        %v714 = vclz %v713
        %v715 = vsub.s32 %v714, 2
        %vm716 = vcmp.gt.s32.totalorder 0, %v715
        %v717 = vsel %vm716, 0, %v715
        %v718 = vsub.s32 32, %v717
        %v719 = vshll.u32 %v710, %v717
        %v720 = vshrl.u32 %v702, %v718
        %v721 = vor.u32 %v719, %v720
        %v722 = vsub.s32 4294967266, %v717
        %v723 = vadd.s32 %v722, 127
        %v724 = vshll.u32 %v723, 23
        %v725 = vor.u32 4788187, %v724
        %v726 = vand.u32 2147483647, %v725
        %v728 = vcvt.s32.f32 %v721
        %v729 = vmul.f32 %v728, %v726
        %v730 = vxor.u32 %v729, 2147483648
        %v731 = vsel %vm648, %v730, %v729
        %v732 = vsub.s32 4, %v708
        %v733 = vsel %vm648, %v732, %v708
        %v734 = vsel %vm647, %v224, %v731
        %v735 = vsel %vm647, 0, %v733
        %v736 = vcosq.f32.pop %v734
        %v737 = vsinq.f32.pop %v734
        %vm738 = vweird.f32 %v224
        %v739 = vand.u32 %v735, 3
        %vm740 = vcmp.lt.s32.totalorder %v739, 2
        %vm741 = vcmp.eq.s32.totalorder %v739, 0
        %v742 = vxor.u32 %v737, 2147483648
        %v743 = vsel %vm741, %v736, %v742
        %vm744 = vcmp.eq.s32.totalorder %v739, 2
        %v745 = vxor.u32 %v736, 2147483648
        %v746 = vsel %vm744, %v745, %v737
        %v747 = vsel %vm740, %v743, %v746
        %v748 = vsel %vm738, nan, %v747
        %v749 = vand.u32 2147483647, %v225
        %vm750 = vcmp.le.f32.partialorder %v749, 0.7853982
        %vm751 = vcmp.lt.s32.totalorder %v225, 0
        %v752 = vand.u32 %v225, 2139095040
        %v753 = vshrl.u32 %v752, 23
        %v754 = vsub.s32 %v753, 127
        %v755 = vand.u32 2147483647, %v225
        %v756 = vand.u32 %v755, 8388607
        %v757 = vor.u32 %v756, 8388608
        %v758 = vsub.s32 0, %v757
        %v759 = vadd.s32 %v754, 1
        %vm760 = vcmp.gt.s32.totalorder %v759, 0
        %v761 = vsel %vm760, %v759, 0
        %v762 = vshrl.u32 %v761, 5
        %v763 = vand.u32 %v761, 31
        %v764 = vsub.s32 32, %v763
        %v765 = vshrl.u32 683565275, %v764
        %v766 = vshll.u32 683565275, %v763
        %v767 = vshrl.u32 2475754826, %v764
        %v768 = vor.u32 %v766, %v767
        %v769 = vshll.u32 2475754826, %v763
        %v770 = vshrl.u32 2131351028, %v764
        %v771 = vor.u32 %v769, %v770
        %v772 = vshll.u32 2131351028, %v763
        %v773 = vshrl.u32 2102212464, %v764
        %v774 = vor.u32 %v772, %v773
        %v775 = vshll.u32 2102212464, %v763
        %v776 = vshrl.u32 920167782, %v764
        %v777 = vor.u32 %v775, %v776
        %v778 = vshll.u32 920167782, %v763
        %v779 = vshrl.u32 1326507024, %v764
        %v780 = vor.u32 %v778, %v779
        %vm781 = vcmp.lt.s32.totalorder %v762, 1
        %vm782 = vcmp.lt.s32.totalorder %v762, 2
        %vm783 = vcmp.lt.s32.totalorder %v762, 3
        %vm784 = vcmp.lt.s32.totalorder %v762, 4
        %v785 = vsel %vm781, %v765, %v768
        %v786 = vsel %vm784, %v774, 2102212464
        %v787 = vsel %vm783, %v771, %v786
        %v788 = vsel %vm782, %v785, %v787
        %v789 = vsel %vm781, %v768, %v771
        %v790 = vsel %vm784, %v777, 920167782
        %v791 = vsel %vm783, %v774, %v790
        %v792 = vsel %vm782, %v789, %v791
        %v793 = vsel %vm781, %v771, %v774
        %v794 = vsel %vm784, %v780, 1326507024
        %v795 = vsel %vm783, %v777, %v794
        %v796 = vsel %vm782, %v793, %v795
        %v797 = vshll.u32 %v757, 8
        %v798 = vmul.u32.u64.compose %v797, %v796
        %v799 = vextract.low.u32 %v798
        %v800 = vextract.high.u32 %v798
        %v801 = vmul.u32.u64.compose %v797, %v792
        %v802 = vextract.low.u32 %v801
        %v803 = vextract.high.u32 %v801
        %v804 = vmul.u32 %v797, %v788
        %v805 = vadd.s32 %v800, %v802
        %vm806 = vc.u32 %v800, %v802
        %v807 = vadd.s32 %v803, 1
        %v808 = vsel %vm806, %v807, %v803
        %v809 = vadd.s32 %v804, %v808
        %v810 = vadd.s32 %v809, 536870912
        %v811 = vshrl.u32 %v810, 30
        %v812 = vshll.u32 %v811, 30
        %v813 = vsub.s32 %v809, %v812
        %vm814 = vcmp.lt.s32.totalorder %v813, 0
        %v815 = vsub.s32 0, %v813
        %v816 = vsel %vm814, %v815, %v813
        %v817 = vclz %v816
        %v818 = vsub.s32 %v817, 2
        %vm819 = vcmp.gt.s32.totalorder 0, %v818
        %v820 = vsel %vm819, 0, %v818
        %v821 = vsub.s32 32, %v820
        %v822 = vshll.u32 %v813, %v820
        %v823 = vshrl.u32 %v805, %v821
        %v824 = vor.u32 %v822, %v823
        %v825 = vsub.s32 4294967266, %v820
        %v826 = vadd.s32 %v825, 127
        %v827 = vshll.u32 %v826, 23
        %v828 = vor.u32 4788187, %v827
        %v829 = vand.u32 2147483647, %v828
        %v831 = vcvt.s32.f32 %v824
        %v832 = vmul.f32 %v831, %v829
        %v833 = vxor.u32 %v832, 2147483648
        %v834 = vsel %vm751, %v833, %v832
        %v835 = vsub.s32 4, %v811
        %v836 = vsel %vm751, %v835, %v811
        %v837 = vsel %vm750, %v225, %v834
        %v838 = vsel %vm750, 0, %v836
        %v839 = vcosq.f32.pop %v837
        %v840 = vsinq.f32.pop %v837
        %vm841 = vweird.f32 %v225
        %v842 = vand.u32 %v838, 3
        %vm843 = vcmp.lt.s32.totalorder %v842, 2
        %vm844 = vcmp.eq.s32.totalorder %v842, 0
        %v845 = vxor.u32 %v840, 2147483648
        %v846 = vsel %vm844, %v839, %v845
        %vm847 = vcmp.eq.s32.totalorder %v842, 2
        %v848 = vxor.u32 %v839, 2147483648
        %v849 = vsel %vm847, %v848, %v840
        %v850 = vsel %vm843, %v846, %v849
        %v851 = vsel %vm841, nan, %v850
        %v852 = vand.u32 2147483647, %v226
        %vm853 = vcmp.le.f32.partialorder %v852, 0.7853982
        %vm854 = vcmp.lt.s32.totalorder %v226, 0
        %v855 = vand.u32 %v226, 2139095040
        %v856 = vshrl.u32 %v855, 23
        %v857 = vsub.s32 %v856, 127
        %v858 = vand.u32 2147483647, %v226
        %v859 = vand.u32 %v858, 8388607
        %v860 = vor.u32 %v859, 8388608
        %v861 = vsub.s32 0, %v860
        %v862 = vadd.s32 %v857, 1
        %vm863 = vcmp.gt.s32.totalorder %v862, 0
        %v864 = vsel %vm863, %v862, 0
        %v865 = vshrl.u32 %v864, 5
        %v866 = vand.u32 %v864, 31
        %v867 = vsub.s32 32, %v866
        %v868 = vshrl.u32 683565275, %v867
        %v869 = vshll.u32 683565275, %v866
        %v870 = vshrl.u32 2475754826, %v867
        %v871 = vor.u32 %v869, %v870
        %v872 = vshll.u32 2475754826, %v866
        %v873 = vshrl.u32 2131351028, %v867
        %v874 = vor.u32 %v872, %v873
        %v875 = vshll.u32 2131351028, %v866
        %v876 = vshrl.u32 2102212464, %v867
        %v877 = vor.u32 %v875, %v876
        %v878 = vshll.u32 2102212464, %v866
        %v879 = vshrl.u32 920167782, %v867
        %v880 = vor.u32 %v878, %v879
        %v881 = vshll.u32 920167782, %v866
        %v882 = vshrl.u32 1326507024, %v867
        %v883 = vor.u32 %v881, %v882
        %vm884 = vcmp.lt.s32.totalorder %v865, 1
        %vm885 = vcmp.lt.s32.totalorder %v865, 2
        %vm886 = vcmp.lt.s32.totalorder %v865, 3
        %vm887 = vcmp.lt.s32.totalorder %v865, 4
        %v888 = vsel %vm884, %v868, %v871
        %v889 = vsel %vm887, %v877, 2102212464
        %v890 = vsel %vm886, %v874, %v889
        %v891 = vsel %vm885, %v888, %v890
        %v892 = vsel %vm884, %v871, %v874
        %v893 = vsel %vm887, %v880, 920167782
        %v894 = vsel %vm886, %v877, %v893
        %v895 = vsel %vm885, %v892, %v894
        %v896 = vsel %vm884, %v874, %v877
        %v897 = vsel %vm887, %v883, 1326507024
        %v898 = vsel %vm886, %v880, %v897
        %v899 = vsel %vm885, %v896, %v898
        %v900 = vshll.u32 %v860, 8
        %v901 = vmul.u32.u64.compose %v900, %v899
        %v902 = vextract.low.u32 %v901
        %v903 = vextract.high.u32 %v901
        %v904 = vmul.u32.u64.compose %v900, %v895
        %v905 = vextract.low.u32 %v904
        %v906 = vextract.high.u32 %v904
        %v907 = vmul.u32 %v900, %v891
        %v908 = vadd.s32 %v903, %v905
        %vm909 = vc.u32 %v903, %v905
        %v910 = vadd.s32 %v906, 1
        %v911 = vsel %vm909, %v910, %v906
        %v912 = vadd.s32 %v907, %v911
        %v913 = vadd.s32 %v912, 536870912
        %v914 = vshrl.u32 %v913, 30
        %v915 = vshll.u32 %v914, 30
        %v916 = vsub.s32 %v912, %v915
        %vm917 = vcmp.lt.s32.totalorder %v916, 0
        %v918 = vsub.s32 0, %v916
        %v919 = vsel %vm917, %v918, %v916
        %v920 = vclz %v919
        %v921 = vsub.s32 %v920, 2
        %vm922 = vcmp.gt.s32.totalorder 0, %v921
        %v923 = vsel %vm922, 0, %v921
        %v924 = vsub.s32 32, %v923
        %v925 = vshll.u32 %v916, %v923
        %v926 = vshrl.u32 %v908, %v924
        %v927 = vor.u32 %v925, %v926
        %v928 = vsub.s32 4294967266, %v923
        %v929 = vadd.s32 %v928, 127
        %v930 = vshll.u32 %v929, 23
        %v931 = vor.u32 4788187, %v930
        %v932 = vand.u32 2147483647, %v931
        %v934 = vcvt.s32.f32 %v927
        %v935 = vmul.f32 %v934, %v932
        %v936 = vxor.u32 %v935, 2147483648
        %v937 = vsel %vm854, %v936, %v935
        %v938 = vsub.s32 4, %v914
        %v939 = vsel %vm854, %v938, %v914
        %v940 = vsel %vm853, %v226, %v937
        %v941 = vsel %vm853, 0, %v939
        %v942 = vcosq.f32.pop %v940
        %v943 = vsinq.f32.pop %v940
        %vm944 = vweird.f32 %v226
        %v945 = vand.u32 %v941, 3
        %vm946 = vcmp.lt.s32.totalorder %v945, 2
        %vm947 = vcmp.eq.s32.totalorder %v945, 0
        %v948 = vxor.u32 %v943, 2147483648
        %v949 = vsel %vm947, %v942, %v948
        %vm950 = vcmp.eq.s32.totalorder %v945, 2
        %v951 = vxor.u32 %v942, 2147483648
        %v952 = vsel %vm950, %v951, %v943
        %v953 = vsel %vm946, %v949, %v952
        %v954 = vsel %vm944, nan, %v953
        %v955 = vand.u32 2147483647, %v227
        %vm956 = vcmp.le.f32.partialorder %v955, 0.7853982
        %vm957 = vcmp.lt.s32.totalorder %v227, 0
        %v958 = vand.u32 %v227, 2139095040
        %v959 = vshrl.u32 %v958, 23
        %v960 = vsub.s32 %v959, 127
        %v961 = vand.u32 2147483647, %v227
        %v962 = vand.u32 %v961, 8388607
        %v963 = vor.u32 %v962, 8388608
        %v964 = vsub.s32 0, %v963
        %v965 = vadd.s32 %v960, 1
        %vm966 = vcmp.gt.s32.totalorder %v965, 0
        %v967 = vsel %vm966, %v965, 0
        %v968 = vshrl.u32 %v967, 5
        %v969 = vand.u32 %v967, 31
        %v970 = vsub.s32 32, %v969
        %v971 = vshrl.u32 683565275, %v970
        %v972 = vshll.u32 683565275, %v969
        %v973 = vshrl.u32 2475754826, %v970
        %v974 = vor.u32 %v972, %v973
        %v975 = vshll.u32 2475754826, %v969
        %v976 = vshrl.u32 2131351028, %v970
        %v977 = vor.u32 %v975, %v976
        %v978 = vshll.u32 2131351028, %v969
        %v979 = vshrl.u32 2102212464, %v970
        %v980 = vor.u32 %v978, %v979
        %v981 = vshll.u32 2102212464, %v969
        %v982 = vshrl.u32 920167782, %v970
        %v983 = vor.u32 %v981, %v982
        %v984 = vshll.u32 920167782, %v969
        %v985 = vshrl.u32 1326507024, %v970
        %v986 = vor.u32 %v984, %v985
        %vm987 = vcmp.lt.s32.totalorder %v968, 1
        %vm988 = vcmp.lt.s32.totalorder %v968, 2
        %vm989 = vcmp.lt.s32.totalorder %v968, 3
        %vm990 = vcmp.lt.s32.totalorder %v968, 4
        %v991 = vsel %vm987, %v971, %v974
        %v992 = vsel %vm990, %v980, 2102212464
        %v993 = vsel %vm989, %v977, %v992
        %v994 = vsel %vm988, %v991, %v993
        %v995 = vsel %vm987, %v974, %v977
        %v996 = vsel %vm990, %v983, 920167782
        %v997 = vsel %vm989, %v980, %v996
        %v998 = vsel %vm988, %v995, %v997
        %v999 = vsel %vm987, %v977, %v980
        %v1000 = vsel %vm990, %v986, 1326507024
        %v1001 = vsel %vm989, %v983, %v1000
        %v1002 = vsel %vm988, %v999, %v1001
        %v1003 = vshll.u32 %v963, 8
        %v1004 = vmul.u32.u64.compose %v1003, %v1002
        %v1005 = vextract.low.u32 %v1004
        %v1006 = vextract.high.u32 %v1004
        %v1007 = vmul.u32.u64.compose %v1003, %v998
        %v1008 = vextract.low.u32 %v1007
        %v1009 = vextract.high.u32 %v1007
        %v1010 = vmul.u32 %v1003, %v994
        %v1011 = vadd.s32 %v1006, %v1008
        %vm1012 = vc.u32 %v1006, %v1008
        %v1013 = vadd.s32 %v1009, 1
        %v1014 = vsel %vm1012, %v1013, %v1009
        %v1015 = vadd.s32 %v1010, %v1014
        %v1016 = vadd.s32 %v1015, 536870912
        %v1017 = vshrl.u32 %v1016, 30
        %v1018 = vshll.u32 %v1017, 30
        %v1019 = vsub.s32 %v1015, %v1018
        %vm1020 = vcmp.lt.s32.totalorder %v1019, 0
        %v1021 = vsub.s32 0, %v1019
        %v1022 = vsel %vm1020, %v1021, %v1019
        %v1023 = vclz %v1022
        %v1024 = vsub.s32 %v1023, 2
        %vm1025 = vcmp.gt.s32.totalorder 0, %v1024
        %v1026 = vsel %vm1025, 0, %v1024
        %v1027 = vsub.s32 32, %v1026
        %v1028 = vshll.u32 %v1019, %v1026
        %v1029 = vshrl.u32 %v1011, %v1027
        %v1030 = vor.u32 %v1028, %v1029
        %v1031 = vsub.s32 4294967266, %v1026
        %v1032 = vadd.s32 %v1031, 127
        %v1033 = vshll.u32 %v1032, 23
        %v1034 = vor.u32 4788187, %v1033
        %v1035 = vand.u32 2147483647, %v1034
        %v1037 = vcvt.s32.f32 %v1030
        %v1038 = vmul.f32 %v1037, %v1035
        %v1039 = vxor.u32 %v1038, 2147483648
        %v1040 = vsel %vm957, %v1039, %v1038
        %v1041 = vsub.s32 4, %v1017
        %v1042 = vsel %vm957, %v1041, %v1017
        %v1043 = vsel %vm956, %v227, %v1040
        %v1044 = vsel %vm956, 0, %v1042
        %v1045 = vcosq.f32.pop %v1043
        %v1046 = vsinq.f32.pop %v1043
        %vm1047 = vweird.f32 %v227
        %v1048 = vand.u32 %v1044, 3
        %vm1049 = vcmp.lt.s32.totalorder %v1048, 2
        %vm1050 = vcmp.eq.s32.totalorder %v1048, 0
        %v1051 = vxor.u32 %v1046, 2147483648
        %v1052 = vsel %vm1050, %v1045, %v1051
        %vm1053 = vcmp.eq.s32.totalorder %v1048, 2
        %v1054 = vxor.u32 %v1045, 2147483648
        %v1055 = vsel %vm1053, %v1054, %v1046
        %v1056 = vsel %vm1049, %v1052, %v1055
        %v1057 = vsel %vm1047, nan, %v1056
        %v1058 = vsel %vm229, 1, 0
        %v1059 = vlaneseq
        %v1060 = vshrl.u32 %v1059, 7
        %v1061 = vsub.s32 0, %v1060
        %v1062 = vrot.slane %v1058, %v1061
        %vm1063 = vcmp.eq.s32.totalorder %v1062, 1
        %v1064 = vsel %vm1063, %v333, %v748
        %v1065 = vsel %vm1063, %v437, %v851
        %v1066 = vsel %vm1063, %v541, %v954
        %v1067 = vsel %vm1063, %v645, %v1057
        %1068 = vst [vmem:[%s164] sm:$0xff] %v1064
        %1069 = vst [vmem:[%s164 + $0x8] sm:$0xff] %v1065
        %1070 = vst [vmem:[%s164 + $0x10] sm:$0xff] %v1066
        %1071 = vst [vmem:[%s164 + $0x18] sm:$0xff] %v1067
        %s1072 = sand.u32 %s93, 1
        %s1073 = scalar_lea.sflag [#allocation3], %s1072
        %s1074 = sand.u32 %s93, 1
        %s1075 = smul.addr %s1074, 32
        %s1076 = scalar_lea.vmem [#allocation2], %s1075
        // Predicated region
        $region33: #{tpu_custom_call.1} parent=31 // pred_check
          %p1077 = pneg %p103
        $region34: #{tpu_custom_call.1} parent=31 // pred_check_branch
          %1079 = sbr.rel (%p1077) target = $region36
        $region35: #{tpu_custom_call.1} parent=31 // pred_region
          %s1080 = smul.u32 4, %s17
          %s1082 = ssub.s32 512, 512
          %1083 = vsyncadd %s1073, %s1082
          %s1084 = smul.addr %s1080, 128
          %s1085 = scalar_lea.hbm %s3, %s1084
          %s1086 = sshll.u32 %s1076, 4
          %s1087 = int_to_ptr.vmem [resolvable:$true] %s1086
          %1092 = dma.vmem_to_hbm [thread:$0]  %s1087, 512, %s1085, %s1073, 128, 128, 8
        $region36: #{tpu_custom_call.1} parent=31 // pred_fallthru
          _
      $region32: #{tpu_custom_call.1} parent=5 // pred_fallthru
        _
      %p1093 = scmp.le.s32.totalorder 2, %s12
      // Predicated region
      $region37: #{tpu_custom_call.1} parent=5 // pred_check
        %p1094 = pneg %p1093
      $region38: #{tpu_custom_call.1} parent=5 // pred_check_branch
        %1096 = sbr.rel (%p1094) target = $region40
      $region39: #{tpu_custom_call.1} parent=5 // pred_region
        %s1097 = ssub.s32 %s12, 2
        // Predicated region
        $region41: #{tpu_custom_call.1} parent=39 // pred_check
          %p1098 = pneg %p109
        $region42: #{tpu_custom_call.1} parent=39 // pred_check_branch
          %1100 = sbr.rel (%p1098) target = $region44
        $region43: #{tpu_custom_call.1} parent=39 // pred_region
          %s1101 = sand.u32 %s94, 1
          %s1102 = scalar_lea.sflag [#allocation3], %s1101
          %s1103 = sand.u32 %s94, 1
          %s1104 = smul.addr %s1103, 32
          %s1105 = scalar_lea.vmem [#allocation2], %s1104
          %1106 = dma.done %s1102, 512
        $region44: #{tpu_custom_call.1} parent=39 // pred_fallthru
          _
      $region40: #{tpu_custom_call.1} parent=5 // pred_fallthru
        _
    $region6: #{tpu_custom_call.1} parent=1 // loop_footer
      %s16 = sadd.s32 1, %s12
    $region7: #{tpu_custom_call.1} parent=1 // loop_footer_branch
      %11 = sbr.rel target = $region3
    $region8: #{tpu_custom_call.1} parent=1 // loop_exit
      _
    %1107 = vsyncpa [#allocation3], 1
    %s1108 = scalar_lea.sflag [#allocation3], 1
    %1109 = vsyncpa %s1108, 1

</llo_original>
